<compile_context>
chip_gen: v6e
topology: v6e:2x2x1
jax: 0.10.0
libtpu: 0.0.40
codegen_flags: <defaults>
</compile_context>

<pallas_src>
import functools

import jax
import jax.numpy as jnp
from jax.experimental import pallas as pl
from jax.experimental.pallas import tpu as pltpu

_LANE = 128   # TPU lane width: H and A are padded to multiples of this


def _round_up(x, m):
    return ((x + m - 1) // m) * m


def _actor_kernel(stochastic, x_ref, w1_ref, b1_ref, w2_ref, b2_ref, mask_ref, *rest):
    """One batch tile: MLP head -> bitmask -> log_softmax -> argmax / Gumbel sample."""
    if stochastic:
        noise_ref, action_ref, logp_ref = rest
    else:
        action_ref, logp_ref = rest

    # ----- MLP head: Linear -> ReLU -> Linear (MXU matmuls, f32 accumulate) ---
    x = x_ref[...]                                                    # (TB, D)
    h = jnp.dot(x, w1_ref[...], preferred_element_type=jnp.float32) + b1_ref[...]
    h = jnp.maximum(h, 0.0)                                           # ReLU
    logits = jnp.dot(h, w2_ref[...], preferred_element_type=jnp.float32) + b2_ref[...]
    a_pad = logits.shape[-1]                                          # (TB, Apad)

    # ----- expand packed per-row bitmask (uint32 words) to a lane mask --------
    idx = jax.lax.broadcasted_iota(jnp.int32, logits.shape, dimension=1)
    words = mask_ref[...]                                             # (TB, W) uint32
    allowed = None
    for w in range(words.shape[1]):
        wcol = words[:, w:w + 1]                                      # (TB, 1)
        local = idx - 32 * w
        sh = jnp.clip(local, 0, 31).astype(jnp.uint32)
        bit = ((wcol >> sh) & jnp.uint32(1)) != 0
        part = jnp.logical_and(bit, jnp.logical_and(local >= 0, local < 32))
        allowed = part if allowed is None else jnp.logical_or(allowed, part)
    logits = jnp.where(allowed, logits, jnp.float32(-jnp.inf))

    # ----- log_softmax over the action dim (numerically stable) --------------
    m = jnp.max(logits, axis=-1, keepdims=True)
    z = logits - m
    lse = jnp.log(jnp.sum(jnp.exp(z), axis=-1, keepdims=True))
    logp = z - lse                                                    # (TB, Apad)

    # compact, lane-dense (batch-in-lane) store: (A8, TB)
    a8 = logp_ref.shape[0]
    logp_ref[...] = jnp.transpose(logp)[0:a8, :]

    # ----- action -------------------------------------------------------------
    if stochastic:
        # Gumbel-max: masked lanes are -inf and can never win.
        score = logits + noise_ref[...]
        smax = jnp.max(score, axis=-1, keepdims=True)
    else:
        score = logits                                                # mode == argmax
        smax = m                                                      # reuse row max
    # first index achieving the max (matches jnp/torch argmax tie-breaking)
    action = jnp.min(jnp.where(score >= smax, idx, jnp.int32(a_pad)),
                     axis=-1, keepdims=True)
    action_ref[...] = action.astype(jnp.int32)


def _choose_tiles(batch):
    """Step count first (~1024 rows/step), then the tile size."""
    steps = (batch + 1023) // 1024
    if steps == 1 and batch >= 256:
        steps = 2                       # v7x: let "parallel" use both TensorCores
    if steps == 1:
        tb = _round_up(batch, 8)
    else:
        tb = _round_up((batch + steps - 1) // steps, 128)   # lane-dense logp store
        steps = (batch + tb - 1) // tb
    return tb, steps


@functools.partial(jax.jit, static_argnames=("action_size", "deterministic"))
def discrete_actor_forward(states_encoding, padded_params, action_mask, rng,
                           *, action_size, deterministic=False):
    """Actor head forward.

    states_encoding: (B, D) f32 or bf16.  padded_params: output of pad_params().
    action_mask: (B, action_size) (nonzero == allowed) or None.
    rng: jax PRNG key, only used when deterministic=False.
    Returns (action (B, 1) int32, log_probs (B, action_size) f32).
    """
    w1p, b1p, w2p, b2p = padded_params
    x = states_encoding
    if x.dtype not in (jnp.bfloat16, jnp.float32):
        x = x.astype(jnp.float32)
    B, D = x.shape
    Hp = w1p.shape[1]
    Ap = w2p.shape[1]
    A = action_size
    A8 = _round_up(A, 8)

    TB, steps = _choose_tiles(B)
    B_pad = steps * TB
    if B_pad != B:
        x = jnp.pad(x, ((0, B_pad - B), (0, 0)))          # fusible, no .at[].set copy

    # --- packed per-row bitmask: ceil(A/32) uint32 words (padded bits == 0) ---
    W = (A + 31) // 32
    if action_mask is not None:
        mb = (action_mask != 0)
    else:
        mb = jnp.ones((B, A), jnp.bool_)
    mb = jnp.pad(mb, ((0, 0), (0, W * 32 - A)))
    words = jnp.sum(mb.reshape(B, W, 32).astype(jnp.uint32)
                    << jnp.arange(32, dtype=jnp.uint32),
                    axis=-1, dtype=jnp.uint32)            # (B, W)
    if B_pad != B:
        words = jnp.pad(words, ((0, B_pad - B), (0, 0)))

    stochastic = not deterministic
    batched = lambda i: (i, 0)       # per-step batch tile
    resident = lambda i: (0, 0)      # weights/biases stay VMEM-resident

    inputs = [x, w1p, b1p, w2p, b2p, words]
    in_specs = [
        pl.BlockSpec((TB, D), batched),      # states encoding tile
        pl.BlockSpec((D, Hp), resident),     # w1
        pl.BlockSpec((1, Hp), resident),     # b1
        pl.BlockSpec((Hp, Ap), resident),    # w2
        pl.BlockSpec((1, Ap), resident),     # b2
        pl.BlockSpec((TB, W), batched),      # packed uint32 action bitmask
    ]
    if stochastic:
        # TODO(synk): in-kernel pltpu.prng_* would avoid this DMA but is not
        # lowerable on the CPU interpret fallback; generate Gumbel noise here.
        noise = jax.random.gumbel(rng, (B_pad, Ap), jnp.float32)
        inputs.append(noise)
        in_specs.append(pl.BlockSpec((TB, Ap), batched))

    kernel = functools.partial(_actor_kernel, stochastic)

    action_full, logp_t = pl.pallas_call(
        kernel,
        out_shape=(
            jax.ShapeDtypeStruct((B_pad, 1), jnp.int32),      # action
            jax.ShapeDtypeStruct((A8, B_pad), jnp.float32),   # log_probs, transposed
        ),
        grid_spec=pltpu.PrefetchScalarGridSpec(
            num_scalar_prefetch=0,
            grid=(steps,),
            in_specs=in_specs,
            out_specs=(
                pl.BlockSpec((TB, 1), batched),
                pl.BlockSpec((A8, TB), lambda i: (0, i)),
            ),
        ),
        compiler_params=pltpu.CompilerParams(
            dimension_semantics=("parallel",),       # v7x: batch across both TCs
            vmem_limit_bytes=32 * 1024 * 1024),      # v5e: >16 MiB scoped VMEM
    )(*inputs)

    return action_full[:B], jnp.transpose(logp_t[:A, :B])


def init_params(key, input_size, hidden_size, action_size):
    """make_mlp(input, hidden:int, action)-shaped params (unpadded, PyTorch layout)."""
    k1, k2, k3, k4 = jax.random.split(key, 4)
    lim1 = 1.0 / jnp.sqrt(input_size)
    lim2 = 1.0 / jnp.sqrt(hidden_size)
    w1 = jax.random.uniform(k1, (input_size, hidden_size), jnp.float32, -lim1, lim1)
    b1 = jax.random.uniform(k2, (1, hidden_size), jnp.float32, -lim1, lim1)
    w2 = jax.random.uniform(k3, (hidden_size, action_size), jnp.float32, -lim2, lim2)
    b2 = jax.random.uniform(k4, (1, action_size), jnp.float32, -lim2, lim2)
    return (w1, b1, w2, b2)


def pad_params(params, lane=_LANE):
    """One-time zero-pad of H and A to lane multiples (math is unchanged)."""
    w1, b1, w2, b2 = params
    D, H = w1.shape
    A = w2.shape[1]
    Hp = _round_up(H, lane)
    Ap = _round_up(A, lane)
    w1p = jnp.zeros((D, Hp), jnp.float32).at[:, :H].set(w1)
    b1p = jnp.zeros((1, Hp), jnp.float32).at[:, :H].set(b1)
    w2p = jnp.zeros((Hp, Ap), jnp.float32).at[:H, :A].set(w2)
    b2p = jnp.zeros((1, Ap), jnp.float32).at[:, :A].set(b2)
    return (w1p, b1p, w2p, b2p)


if __name__ == "__main__":
    key = jax.random.PRNGKey(0)
    B, D, H, A = 4, 32, 32, 6          # batch, encoder output, hidden, actions

    k_enc, k_par, k_smp = jax.random.split(key, 3)
    states_encoding = jax.random.normal(k_enc, (B, D), jnp.float32)
    params = init_params(k_par, D, H, A)
    padded_params = pad_params(params)      # one-time, outside the hot path

    # action mask: 1 == allowed, 0 == forbidden (each row keeps >= 1 valid action)
    action_mask = jnp.ones((B, A), jnp.float32)
    action_mask = action_mask.at[0, 0].set(0.0).at[2, 4].set(0.0).at[2, 5].set(0.0)

    # deterministic (mode) path
    action_det, logp = discrete_actor_forward(
        states_encoding, padded_params, action_mask, None,
        action_size=A, deterministic=True)
    # stochastic (sample) path via Gumbel-max
    action_smp, logp_smp = discrete_actor_forward(
        states_encoding, padded_params, action_mask, k_smp,
        action_size=A, deterministic=False)
    jax.block_until_ready((action_det, action_smp, logp, logp_smp))

    # ---- pure-JAX reference check -------------------------------------------
    w1, b1, w2, b2 = params
    ref_logits = jnp.maximum(states_encoding @ w1 + b1, 0.0) @ w2 + b2
    ref_logits = jnp.where(action_mask == 0, -jnp.inf, ref_logits)
    ref_logp = jax.nn.log_softmax(ref_logits, axis=1)
    ref_action = jnp.argmax(ref_logits, axis=-1, keepdims=True).astype(jnp.int32)

    assert jnp.allclose(logp, ref_logp, atol=1e-5), "log_probs mismatch (det)"
    assert jnp.allclose(logp_smp, ref_logp, atol=1e-5), "log_probs mismatch (smp)"
    assert jnp.array_equal(action_det, ref_action), "mode action mismatch"
    # sampled actions are in range and never pick a masked-out action
    smp = action_smp[:, 0]
    assert jnp.all((smp >= 0) & (smp < A)), "sampled action out of range"
    assert bool(jnp.all(action_mask[jnp.arange(B), smp] != 0)), "sampled a masked action"

    print("KERNEL_OK")
</pallas_src>

<mosaic_0001>
module attributes {stable_mosaic.version = 11 : i64} {
  func.func @_actor_kernel(%arg0: i32, %arg1: memref<8x32xf32, #tpu.memory_space<vmem>>, %arg2: memref<32x128xf32, #tpu.memory_space<vmem>>, %arg3: memref<1x128xf32, #tpu.memory_space<vmem>>, %arg4: memref<128x128xf32, #tpu.memory_space<vmem>>, %arg5: memref<1x128xf32, #tpu.memory_space<vmem>>, %arg6: memref<8x1xi32, #tpu.memory_space<vmem>>, %arg7: memref<8x1xi32, #tpu.memory_space<vmem>>, %arg8: memref<8x8xf32, #tpu.memory_space<vmem>>) attributes {dimension_semantics = [#tpu.dimension_semantics<parallel>], iteration_bounds = array<i64: 1>, scalar_prefetch = 0 : i64, scratch_operands = 0 : i64, tpu.core_type = #tpu.core_type<tc>, window_params = [{transform_indices = @transform_0, window_bounds = array<i64: 8, 32>}, {pipeline_mode = #tpu.pipeline_mode<synchronous>, transform_indices = @transform_1, window_bounds = array<i64: 32, 128>}, {pipeline_mode = #tpu.pipeline_mode<synchronous>, transform_indices = @transform_2, window_bounds = array<i64: 1, 128>}, {pipeline_mode = #tpu.pipeline_mode<synchronous>, transform_indices = @transform_3, window_bounds = array<i64: 128, 128>}, {pipeline_mode = #tpu.pipeline_mode<synchronous>, transform_indices = @transform_4, window_bounds = array<i64: 1, 128>}, {transform_indices = @transform_5, window_bounds = array<i64: 8, 1>}, {transform_indices = @transform_6, window_bounds = array<i64: 8, 1>}, {transform_indices = @transform_7, window_bounds = array<i64: 8, 8>}]} {
    %c0 = arith.constant 0 : index
    %c0_0 = arith.constant 0 : index
    %0 = vector.load %arg1[%c0, %c0_0] : memref<8x32xf32, #tpu.memory_space<vmem>>, vector<8x32xf32>
    %c0_1 = arith.constant 0 : index
    %c0_2 = arith.constant 0 : index
    %1 = vector.load %arg2[%c0_1, %c0_2] : memref<32x128xf32, #tpu.memory_space<vmem>>, vector<32x128xf32>
    %cst = arith.constant dense<0.000000e+00> : vector<8x128xf32>
    %2 = tpu.matmul %0, %1, %cst {dimension_numbers = #tpu.dot_dimension_numbers<[1], [0], [0], [1], [0, 0, 1, 1], [], []>} : vector<8x32xf32>, vector<32x128xf32>, vector<8x128xf32> -> vector<8x128xf32>
    %c0_3 = arith.constant 0 : index
    %c0_4 = arith.constant 0 : index
    %3 = vector.load %arg3[%c0_3, %c0_4] : memref<1x128xf32, #tpu.memory_space<vmem>>, vector<1x128xf32>
    %4 = vector.broadcast %3 : vector<1x128xf32> to vector<8x128xf32>
    %5 = arith.addf %2, %4 : vector<8x128xf32>
    %cst_5 = arith.constant 0.000000e+00 : f32
    %6 = vector.broadcast %cst_5 : f32 to vector<8x128xf32>
    %7 = arith.maximumf %5, %6 : vector<8x128xf32>
    %c0_6 = arith.constant 0 : index
    %c0_7 = arith.constant 0 : index
    %8 = vector.load %arg4[%c0_6, %c0_7] : memref<128x128xf32, #tpu.memory_space<vmem>>, vector<128x128xf32>
    %cst_8 = arith.constant dense<0.000000e+00> : vector<8x128xf32>
    %9 = tpu.matmul %7, %8, %cst_8 {dimension_numbers = #tpu.dot_dimension_numbers<[1], [0], [0], [1], [0, 0, 1, 1], [], []>} : vector<8x128xf32>, vector<128x128xf32>, vector<8x128xf32> -> vector<8x128xf32>
    %c0_9 = arith.constant 0 : index
    %c0_10 = arith.constant 0 : index
    %10 = vector.load %arg5[%c0_9, %c0_10] : memref<1x128xf32, #tpu.memory_space<vmem>>, vector<1x128xf32>
    %11 = vector.broadcast %10 : vector<1x128xf32> to vector<8x128xf32>
    %12 = arith.addf %9, %11 : vector<8x128xf32>
    %13 = tpu.iota {dimensions = array<i32: 1>} : vector<8x128xi32>
    %c0_11 = arith.constant 0 : index
    %c0_12 = arith.constant 0 : index
    %14 = vector.load %arg6[%c0_11, %c0_12] : memref<8x1xi32, #tpu.memory_space<vmem>>, vector<8x1xi32>
    %c0_i32 = arith.constant 0 : i32
    %15 = vector.broadcast %c0_i32 : i32 to vector<8x128xi32>
    %16 = arith.subi %13, %15 : vector<8x128xi32>
    %c0_i32_13 = arith.constant 0 : i32
    %c31_i32 = arith.constant 31 : i32
    %17 = vector.broadcast %c0_i32_13 : i32 to vector<8x128xi32>
    %18 = arith.maxsi %17, %16 : vector<8x128xi32>
    %19 = vector.broadcast %c31_i32 : i32 to vector<8x128xi32>
    %20 = arith.minsi %19, %18 : vector<8x128xi32>
    %21 = vector.broadcast %14 : vector<8x1xi32> to vector<8x128xi32>
    %22 = arith.shrui %21, %20 : vector<8x128xi32>
    %c1_i32 = arith.constant 1 : i32
    %23 = vector.broadcast %c1_i32 : i32 to vector<8x128xi32>
    %24 = arith.andi %22, %23 : vector<8x128xi32>
    %c0_i32_14 = arith.constant 0 : i32
    %25 = vector.broadcast %c0_i32_14 : i32 to vector<8x128xi32>
    %26 = arith.cmpi ne, %24, %25 : vector<8x128xi32>
    %c0_i32_15 = arith.constant 0 : i32
    %27 = vector.broadcast %c0_i32_15 : i32 to vector<8x128xi32>
    %28 = arith.cmpi sge, %16, %27 : vector<8x128xi32>
    %c32_i32 = arith.constant 32 : i32
    %29 = vector.broadcast %c32_i32 : i32 to vector<8x128xi32>
    %30 = arith.cmpi slt, %16, %29 : vector<8x128xi32>
    %31 = arith.andi %28, %30 : vector<8x128xi1>
    %32 = arith.andi %26, %31 : vector<8x128xi1>
    %cst_16 = arith.constant 0xFF800000 : f32
    %33 = vector.broadcast %cst_16 : f32 to vector<8x128xf32>
    %34 = arith.select %32, %12, %33 : vector<8x128xi1>, vector<8x128xf32>
    %cst_17 = arith.constant dense<0xFF800000> : vector<8xf32>
    %35 = vector.multi_reduction <maximumf>, %34, %cst_17 [1] : vector<8x128xf32> to vector<8xf32>
    %36 = vector.shape_cast %35 : vector<8xf32> to vector<8x1xf32>
    %37 = vector.broadcast %36 : vector<8x1xf32> to vector<8x128xf32>
    %38 = arith.subf %34, %37 : vector<8x128xf32>
    %39 = math.exp %38 : vector<8x128xf32>
    %cst_18 = arith.constant dense<0.000000e+00> : vector<8xf32>
    %40 = vector.multi_reduction <add>, %39, %cst_18 [1] : vector<8x128xf32> to vector<8xf32>
    %41 = vector.shape_cast %40 : vector<8xf32> to vector<8x1xf32>
    %42 = math.log %41 : vector<8x1xf32>
    %43 = vector.broadcast %42 : vector<8x1xf32> to vector<8x128xf32>
    %44 = arith.subf %38, %43 : vector<8x128xf32>
    %45 = tpu.transpose %44, [1, 0] : vector<8x128xf32> -> vector<128x8xf32>
    %46 = vector.extract_strided_slice %45 {offsets = [0, 0], sizes = [8, 8], strides = [1, 1]} : vector<128x8xf32> to vector<8x8xf32>
    %c0_19 = arith.constant 0 : index
    %c0_20 = arith.constant 0 : index
    %47 = vector.load %arg8[%c0_19, %c0_20] : memref<8x8xf32, #tpu.memory_space<vmem>>, vector<8x8xf32>
    tpu.vector_store %arg8[%c0_19, %c0_20], %46 {strides = array<i32>} : memref<8x8xf32, #tpu.memory_space<vmem>>, vector<8x8xf32>,
    %48 = vector.broadcast %36 : vector<8x1xf32> to vector<8x128xf32>
    %49 = arith.cmpf oge, %34, %48 : vector<8x128xf32>
    %c128_i32 = arith.constant 128 : i32
    %50 = vector.broadcast %c128_i32 : i32 to vector<8x128xi32>
    %51 = arith.select %49, %13, %50 : vector<8x128xi1>, vector<8x128xi32>
    %cst_21 = arith.constant dense<2147483647> : vector<8xi32>
    %52 = vector.multi_reduction <minsi>, %51, %cst_21 [1] : vector<8x128xi32> to vector<8xi32>
    %53 = vector.shape_cast %52 : vector<8xi32> to vector<8x1xi32>
    %c0_22 = arith.constant 0 : index
    %c0_23 = arith.constant 0 : index
    %54 = vector.load %arg7[%c0_22, %c0_23] : memref<8x1xi32, #tpu.memory_space<vmem>>, vector<8x1xi32>
    tpu.vector_store %arg7[%c0_22, %c0_23], %53 {strides = array<i32>} : memref<8x1xi32, #tpu.memory_space<vmem>>, vector<8x1xi32>,
    return
  }
  func.func @transform_0(%arg0: i32) -> (i32, i32) {
    %c0_i32 = arith.constant 0 : i32
    %c0_i32_0 = arith.constant 0 : i32
    return %arg0, %c0_i32 : i32, i32
  }
  func.func @transform_1(%arg0: i32) -> (i32, i32) {
    %c0_i32 = arith.constant 0 : i32
    %c0_i32_0 = arith.constant 0 : i32
    %c0_i32_1 = arith.constant 0 : i32
    return %c0_i32, %c0_i32_0 : i32, i32
  }
  func.func @transform_2(%arg0: i32) -> (i32, i32) {
    %c0_i32 = arith.constant 0 : i32
    %c0_i32_0 = arith.constant 0 : i32
    %c0_i32_1 = arith.constant 0 : i32
    return %c0_i32, %c0_i32_0 : i32, i32
  }
  func.func @transform_3(%arg0: i32) -> (i32, i32) {
    %c0_i32 = arith.constant 0 : i32
    %c0_i32_0 = arith.constant 0 : i32
    %c0_i32_1 = arith.constant 0 : i32
    return %c0_i32, %c0_i32_0 : i32, i32
  }
  func.func @transform_4(%arg0: i32) -> (i32, i32) {
    %c0_i32 = arith.constant 0 : i32
    %c0_i32_0 = arith.constant 0 : i32
    %c0_i32_1 = arith.constant 0 : i32
    return %c0_i32, %c0_i32_0 : i32, i32
  }
  func.func @transform_5(%arg0: i32) -> (i32, i32) {
    %c0_i32 = arith.constant 0 : i32
    %c0_i32_0 = arith.constant 0 : i32
    return %arg0, %c0_i32 : i32, i32
  }
  func.func @transform_6(%arg0: i32) -> (i32, i32) {
    %c0_i32 = arith.constant 0 : i32
    %c0_i32_0 = arith.constant 0 : i32
    return %arg0, %c0_i32 : i32, i32
  }
  func.func @transform_7(%arg0: i32) -> (i32, i32) {
    %c0_i32 = arith.constant 0 : i32
    %c0_i32_0 = arith.constant 0 : i32
    return %c0_i32, %arg0 : i32, i32
  }
}

</mosaic_0001>

<llo_original>
// kernel: discrete_actor_forward.1
$region0: #{discrete_actor_forward.1}
  #allocation0 [shape = 'u32[]', space=smem, size = 0x4, offset = 0x4, fixed_abs, tag = 'smem constant byte address 0x4 - core index']
  #allocation1 [shape = 'u32[144,128]{1,0:T(1,128)}', space=vmem, size = 0x12000, scoped, tag = 'internal scratch']
  %s0 = inlined_call_operand.vmem [shape: f32[8,32], index: 0, kind: input, shape index: {}]
  %s1 = inlined_call_operand.vmem [shape: f32[32,128], index: 1, kind: input, shape index: {}]
  %s2 = inlined_call_operand.vmem [shape: f32[1,128], index: 2, kind: input, shape index: {}]
  %s3 = inlined_call_operand.hbm [shape: f32[128,128], index: 3, kind: input, shape index: {}]
  %s4 = inlined_call_operand.vmem [shape: f32[1,128], index: 4, kind: input, shape index: {}]
  %s5 = inlined_call_operand.vmem [shape: u32[8,1], index: 5, kind: input, shape index: {}]
  %s6 = inlined_call_operand.vmem [shape: s32[8,1], index: 6, kind: output, shape index: {0}]
  %s7 = inlined_call_operand.vmem [shape: f32[8,8], index: 7, kind: output, shape index: {1}]
  %8 = xla_tuple %s6, %s7
  %s9 = sld [smem:[#allocation0]]
  $region46: #{discrete_actor_forward.1} parent=0
    _
  %s11 = ssub.s32 1, %s9
  %s12 = scalar_select 0, %s11, %s9
  $region1: #{discrete_actor_forward.1} parent=0
    #allocation2 [shape = 'u8[65536]{0}', space=vmem, size = 0x10000, scoped, tag = 'input window, operand 3, single buffered']
    #allocation3 [shape = 's32[1]{0}', space=sflag, size = 0x4, scoped, tag = 'scoped memory for discrete_actor_forward.1']
    %13 = vsyncpa [#allocation3], 0
    // Predicated region
    $region2: #{discrete_actor_forward.1} parent=1 // pred_check
      _
    $region3: #{discrete_actor_forward.1} parent=1 // pred_check_branch
      %15 = sbr.rel (0) target = $region5
    $region4: #{discrete_actor_forward.1} parent=1 // pred_region
      _
    $region5: #{discrete_actor_forward.1} parent=1 // pred_fallthru
      _
    // Predicated region
    $region6: #{discrete_actor_forward.1} parent=1 // pred_check
      _
    $region7: #{discrete_actor_forward.1} parent=1 // pred_check_branch
      %17 = sbr.rel (0) target = $region9
    $region8: #{discrete_actor_forward.1} parent=1 // pred_region
      _
    $region9: #{discrete_actor_forward.1} parent=1 // pred_fallthru
      _
    // Predicated region
    $region10: #{discrete_actor_forward.1} parent=1 // pred_check
      _
    $region11: #{discrete_actor_forward.1} parent=1 // pred_check_branch
      %19 = sbr.rel (0) target = $region13
    $region12: #{discrete_actor_forward.1} parent=1 // pred_region
      _
    $region13: #{discrete_actor_forward.1} parent=1 // pred_fallthru
      _
    // Predicated region
    $region14: #{discrete_actor_forward.1} parent=1 // pred_check
      _
    $region15: #{discrete_actor_forward.1} parent=1 // pred_check_branch
      %21 = sbr.rel (0) target = $region17
    $region16: #{discrete_actor_forward.1} parent=1 // pred_region
      %s23 = ssub.s32 2048, 2048
      %24 = vsyncadd [#allocation3], %s23
      %s25 = sshll.u32 [#allocation2], 4
      %s26 = int_to_ptr.vmem [resolvable:$true] %s25
      %31 = dma.hbm_to_vmem [thread:$0]  %s3, 2048, %s26, [#allocation3], 128, 128, 8
    $region17: #{discrete_actor_forward.1} parent=1 // pred_fallthru
      _
    // Predicated region
    $region18: #{discrete_actor_forward.1} parent=1 // pred_check
      _
    $region19: #{discrete_actor_forward.1} parent=1 // pred_check_branch
      %33 = sbr.rel (0) target = $region21
    $region20: #{discrete_actor_forward.1} parent=1 // pred_region
      _
    $region21: #{discrete_actor_forward.1} parent=1 // pred_fallthru
      _
    // Predicated region
    $region22: #{discrete_actor_forward.1} parent=1 // pred_check
      _
    $region23: #{discrete_actor_forward.1} parent=1 // pred_check_branch
      %35 = sbr.rel (0) target = $region25
    $region24: #{discrete_actor_forward.1} parent=1 // pred_region
      _
    $region25: #{discrete_actor_forward.1} parent=1 // pred_fallthru
      _
    // Predicated region
    $region26: #{discrete_actor_forward.1} parent=1 // pred_check
      _
    $region27: #{discrete_actor_forward.1} parent=1 // pred_check_branch
      %37 = sbr.rel (0) target = $region29
    $region28: #{discrete_actor_forward.1} parent=1 // pred_region
      %38 = dma.done [#allocation3], 2048
    $region29: #{discrete_actor_forward.1} parent=1 // pred_fallthru
      _
    %v39 = vld [vmem:[%s0] sm:$0xff]
    %v40 = vld [vmem:[%s1] sm:$0xff]
    %v41 = vld [vmem:[%s1 + $0x8] sm:$0xff]
    %v42 = vld [vmem:[%s1 + $0x10] sm:$0xff]
    %v43 = vld [vmem:[%s1 + $0x18] sm:$0xff]
    %v44 = vld [vmem:[%s2] sm:$0x1]
    %v46 = vlaneseq
    %v47 = vshrl.u32 %v46, 7
    %v48 = vsub.s32 0, %v47
    %v49 = vrot.slane %v44, %v48
    %vm51 = vcmask 261120
    %v53 = vsel %vm51, %v39, 0
    %55 = vmatprep.subr.mxu0 0.0
    %56 = vmatpush1.msra.mxu0 0.0
    %57 = vmatprep.subr.mxu0 0.0
    %58 = vmatpush1.msra.mxu0 0.0
    %59 = vmatprep.subr.mxu0 0.0
    %60 = vmatpush1.msra.mxu0 0.0
    %61 = vmatprep.subr.mxu0 0.0
    %62 = vmatpush1.msra.mxu0 0.0
    %63 = vmatprep.subr.mxu0 0.0
    %64 = vmatpush1.msra.mxu0 0.0
    %65 = vmatprep.subr.mxu0 0.0
    %66 = vmatpush1.msra.mxu0 0.0
    %67 = vmatprep.subr.mxu0 0.0
    %68 = vmatpush1.msra.mxu0 0.0
    %69 = vmatprep.subr.mxu0 0.0
    %70 = vmatpush1.msra.mxu0 0.0
    %71 = vmatprep.subr.mxu0 0.0
    %72 = vmatpush1.msra.mxu0 0.0
    %73 = vmatprep.subr.mxu0 0.0
    %74 = vmatpush1.msra.mxu0 0.0
    %75 = vmatprep.subr.mxu0 0.0
    %76 = vmatpush1.msra.mxu0 0.0
    %77 = vmatprep.subr.mxu0 0.0
    %78 = vmatpush1.msra.mxu0 0.0
    %79 = vmatprep.subr.mxu0 0.0
    %80 = vmatpush1.msra.mxu0 %v43
    %81 = vmatprep.subr.mxu0 0.0
    %82 = vmatpush1.msra.mxu0 %v42
    %83 = vmatprep.subr.mxu0 0.0
    %84 = vmatpush1.msra.mxu0 %v41
    %85 = vmatprep.subr.mxu0 0.0
    %86 = vmatpush1.msra.mxu0 %v40
    %87 = vmatprep.subr.mxu0 0.0
    %88 = vmatpush2.msra.mxu0 0.0
    %89 = vmatprep.subr.mxu0 0.0
    %90 = vmatpush2.msra.mxu0 0.0
    %91 = vmatprep.subr.mxu0 0.0
    %92 = vmatpush2.msra.mxu0 0.0
    %93 = vmatprep.subr.mxu0 0.0
    %94 = vmatpush2.msra.mxu0 0.0
    %95 = vmatprep.subr.mxu0 0.0
    %96 = vmatpush2.msra.mxu0 0.0
    %97 = vmatprep.subr.mxu0 0.0
    %98 = vmatpush2.msra.mxu0 0.0
    %99 = vmatprep.subr.mxu0 0.0
    %100 = vmatpush2.msra.mxu0 0.0
    %101 = vmatprep.subr.mxu0 0.0
    %102 = vmatpush2.msra.mxu0 0.0
    %103 = vmatprep.subr.mxu0 0.0
    %104 = vmatpush2.msra.mxu0 0.0
    %105 = vmatprep.subr.mxu0 0.0
    %106 = vmatpush2.msra.mxu0 0.0
    %107 = vmatprep.subr.mxu0 0.0
    %108 = vmatpush2.msra.mxu0 0.0
    %109 = vmatprep.subr.mxu0 0.0
    %110 = vmatpush2.msra.mxu0 0.0
    %111 = vmatprep.subr.mxu0 0.0
    %112 = vmatpush2.msra.mxu0 0.0
    %113 = vmatprep.subr.mxu0 0.0
    %114 = vmatpush2.msra.mxu0 0.0
    %115 = vmatprep.subr.mxu0 0.0
    %116 = vmatpush2.msra.mxu0 0.0
    %117 = vmatprep.subr.mxu0 0.0
    %118 = vmatpush2.msra.mxu0 0.0
    %119 = vmatprep.mubr.f32.mxu0 0.0
    %120 = vmatmul.mubr.f32.gmra.mxu0 %v53
    %v121 = vpop.f32.mrf.mxu0
    %v122 = vadd.f32 %v49, %v121
    %v123 = vpop.f32.mrf.mxu0
    %124 = vdwg.mxu0
    %v125 = vmax.f32 %v122, 0.0
    %v126 = vld [vmem:[#allocation2] sm:$0xff]
    %v127 = vld [vmem:[#allocation2 + $0x8] sm:$0xff]
    %v128 = vld [vmem:[#allocation2 + $0x10] sm:$0xff]
    %v129 = vld [vmem:[#allocation2 + $0x18] sm:$0xff]
    %v130 = vld [vmem:[#allocation2 + $0x20] sm:$0xff]
    %v131 = vld [vmem:[#allocation2 + $0x28] sm:$0xff]
    %v132 = vld [vmem:[#allocation2 + $0x30] sm:$0xff]
    %v133 = vld [vmem:[#allocation2 + $0x38] sm:$0xff]
    %v134 = vld [vmem:[#allocation2 + $0x40] sm:$0xff]
    %v135 = vld [vmem:[#allocation2 + $0x48] sm:$0xff]
    %v136 = vld [vmem:[#allocation2 + $0x50] sm:$0xff]
    %v137 = vld [vmem:[#allocation2 + $0x58] sm:$0xff]
    %v138 = vld [vmem:[#allocation2 + $0x60] sm:$0xff]
    %v139 = vld [vmem:[#allocation2 + $0x68] sm:$0xff]
    %v140 = vld [vmem:[#allocation2 + $0x70] sm:$0xff]
    %v141 = vld [vmem:[#allocation2 + $0x78] sm:$0xff]
    %v142 = vld [vmem:[%s4] sm:$0x1]
    %v144 = vlaneseq
    %v145 = vshrl.u32 %v144, 7
    %v146 = vsub.s32 0, %v145
    %v147 = vrot.slane %v142, %v146
    %149 = vmatprep.subr.mxu0 0.0
    %150 = vmatpush1.msra.mxu0 %v141
    %151 = vmatprep.subr.mxu0 0.0
    %152 = vmatpush1.msra.mxu0 %v140
    %153 = vmatprep.subr.mxu0 0.0
    %154 = vmatpush1.msra.mxu0 %v139
    %155 = vmatprep.subr.mxu0 0.0
    %156 = vmatpush1.msra.mxu0 %v138
    %157 = vmatprep.subr.mxu0 0.0
    %158 = vmatpush1.msra.mxu0 %v137
    %159 = vmatprep.subr.mxu0 0.0
    %160 = vmatpush1.msra.mxu0 %v136
    %161 = vmatprep.subr.mxu0 0.0
    %162 = vmatpush1.msra.mxu0 %v135
    %163 = vmatprep.subr.mxu0 0.0
    %164 = vmatpush1.msra.mxu0 %v134
    %165 = vmatprep.subr.mxu0 0.0
    %166 = vmatpush1.msra.mxu0 %v133
    %167 = vmatprep.subr.mxu0 0.0
    %168 = vmatpush1.msra.mxu0 %v132
    %169 = vmatprep.subr.mxu0 0.0
    %170 = vmatpush1.msra.mxu0 %v131
    %171 = vmatprep.subr.mxu0 0.0
    %172 = vmatpush1.msra.mxu0 %v130
    %173 = vmatprep.subr.mxu0 0.0
    %174 = vmatpush1.msra.mxu0 %v129
    %175 = vmatprep.subr.mxu0 0.0
    %176 = vmatpush1.msra.mxu0 %v128
    %177 = vmatprep.subr.mxu0 0.0
    %178 = vmatpush1.msra.mxu0 %v127
    %179 = vmatprep.subr.mxu0 0.0
    %180 = vmatpush1.msra.mxu0 %v126
    %181 = vmatprep.subr.mxu0 0.0
    %182 = vmatpush2.msra.mxu0 0.0
    %183 = vmatprep.subr.mxu0 0.0
    %184 = vmatpush2.msra.mxu0 0.0
    %185 = vmatprep.subr.mxu0 0.0
    %186 = vmatpush2.msra.mxu0 0.0
    %187 = vmatprep.subr.mxu0 0.0
    %188 = vmatpush2.msra.mxu0 0.0
    %189 = vmatprep.subr.mxu0 0.0
    %190 = vmatpush2.msra.mxu0 0.0
    %191 = vmatprep.subr.mxu0 0.0
    %192 = vmatpush2.msra.mxu0 0.0
    %193 = vmatprep.subr.mxu0 0.0
    %194 = vmatpush2.msra.mxu0 0.0
    %195 = vmatprep.subr.mxu0 0.0
    %196 = vmatpush2.msra.mxu0 0.0
    %197 = vmatprep.subr.mxu0 0.0
    %198 = vmatpush2.msra.mxu0 0.0
    %199 = vmatprep.subr.mxu0 0.0
    %200 = vmatpush2.msra.mxu0 0.0
    %201 = vmatprep.subr.mxu0 0.0
    %202 = vmatpush2.msra.mxu0 0.0
    %203 = vmatprep.subr.mxu0 0.0
    %204 = vmatpush2.msra.mxu0 0.0
    %205 = vmatprep.subr.mxu0 0.0
    %206 = vmatpush2.msra.mxu0 0.0
    %207 = vmatprep.subr.mxu0 0.0
    %208 = vmatpush2.msra.mxu0 0.0
    %209 = vmatprep.subr.mxu0 0.0
    %210 = vmatpush2.msra.mxu0 0.0
    %211 = vmatprep.subr.mxu0 0.0
    %212 = vmatpush2.msra.mxu0 0.0
    %213 = vmatprep.mubr.f32.mxu0 0.0
    %214 = vmatmul.mubr.f32.gmra.mxu0 %v125
    %v215 = vpop.f32.mrf.mxu0
    %v216 = vadd.f32 %v147, %v215
    %v217 = vpop.f32.mrf.mxu0
    %218 = vdwg.mxu0
    %v219 = vlaneseq
    %v220 = vand.u32 %v219, 127
    %v221 = vld [vmem:[%s5] sm:$0xff]
    %vm222 = vcmp.gt.s32.totalorder %v220, 0
    %v223 = vsel %vm222, %v220, 0
    %vm224 = vcmp.lt.s32.totalorder %v223, 31
    %v225 = vsel %vm224, %v223, 31
    %226 = vset.pattern.permute.xlu0 0
    %227 = vperm.xlu0 %226, %v221
    %v228 = vpop.permute.xlu0 %227
    %v229 = vshrl.u32 %v228, %v225
    %v230 = vand.u32 %v229, 1
    %vm231 = vcmp.ne.s32.totalorder %v230, 0
    %vm232 = vcmp.ge.s32.totalorder %v220, 0
    %vm233 = vcmp.lt.s32.totalorder %v220, 32
    %vm234 = vmand %vm232, %vm233
    %vm235 = vmand %vm231, %vm234
    %v236 = vsel %vm235, %v216, -inf
    %237 = vmax.xlane.f32.xlu0 %v236
    %v238 = vpop.xlane.xlu0 %237
    %v239 = vsub.f32 %v236, %v238
    %v240 = vmul.f32 %v239, 1.442695
    %v241 = vpow.pop %v240
    %242 = vadd.xlane.f32.xlu0 %v241
    %v243 = vpop.xlane.xlu0 %242
    %v244 = vlog2.pop %v243
    %v245 = vmul.f32 %v244, 0.6931472
    %v246 = vsub.f32 %v239, %v245
    %247 = vxpose.xlu0.b32.start [1/16] %v246, 128
    %248 = vxpose.xlu0.b32.cont [2/16] 0.0, 128
    %249 = vxpose.xlu0.b32.cont [3/16] 0.0, 128
    %250 = vxpose.xlu0.b32.cont [4/16] 0.0, 128
    %251 = vxpose.xlu0.b32.cont [5/16] 0.0, 128
    %252 = vxpose.xlu0.b32.cont [6/16] 0.0, 128
    %253 = vxpose.xlu0.b32.cont [7/16] 0.0, 128
    %254 = vxpose.xlu0.b32.cont [8/16] 0.0, 128
    %255 = vxpose.xlu0.b32.cont [9/16] 0.0, 128
    %256 = vxpose.xlu0.b32.cont [10/16] 0.0, 128
    %257 = vxpose.xlu0.b32.cont [11/16] 0.0, 128
    %258 = vxpose.xlu0.b32.cont [12/16] 0.0, 128
    %259 = vxpose.xlu0.b32.cont [13/16] 0.0, 128
    %260 = vxpose.xlu0.b32.cont [14/16] 0.0, 128
    %261 = vxpose.xlu0.b32.cont [15/16] 0.0, 128
    %262 = vxpose.xlu0.b32.end [16/16] 0.0, 128
    %v263 = vpop.trf.xlu0
    %v264 = vpop.trf.xlu0
    %v265 = vpop.trf.xlu0
    %v266 = vpop.trf.xlu0
    %v267 = vpop.trf.xlu0
    %v268 = vpop.trf.xlu0
    %v269 = vpop.trf.xlu0
    %v270 = vpop.trf.xlu0
    %v271 = vpop.trf.xlu0
    %v272 = vpop.trf.xlu0
    %v273 = vpop.trf.xlu0
    %v274 = vpop.trf.xlu0
    %v275 = vpop.trf.xlu0
    %v276 = vpop.trf.xlu0
    %v277 = vpop.trf.xlu0
    %v278 = vpop.trf.xlu0
    %vm279 = vcmask 64512
    %280 = vst.msk [vmem:[%s7] sm:$0xff] %vm279, %v263
    %vm281 = vcmp.ge.f32.partialorder %v236, %v238
    %v282 = vsel %vm281, %v220, 128
    %v283 = vand.u32 %v282, 65535
    %v284 = vshra.s32 %v282, 16
    %v285 = vcvt.s32.f32 %v283
    %v286 = vcvt.s32.f32 %v284
    %287 = vmin.xlane.f32.xlu0 %v286
    %v288 = vpop.xlane.xlu0 %287
    %vm289 = vcmp.eq.f32.partialorder %v286, %v288
    %v290 = vsel %vm289, %v285, inf
    %291 = vmin.xlane.f32.xlu0 %v290
    %v292 = vpop.xlane.xlu0 %291
    %v293 = vcvt.f32.s32 %v292
    %v294 = vcvt.f32.s32 %v288
    %v295 = vshll.u32 %v294, 16
    %v296 = vadd.s32 %v295, %v293
    %vm297 = vcmask 7168
    %298 = vst.msk [vmem:[%s6] sm:$0xff] %vm297, %v296
    // Predicated region
    $region30: #{discrete_actor_forward.1} parent=1 // pred_check
      _
    $region31: #{discrete_actor_forward.1} parent=1 // pred_check_branch
      %300 = sbr.rel (0) target = $region33
    $region32: #{discrete_actor_forward.1} parent=1 // pred_region
      _
    $region33: #{discrete_actor_forward.1} parent=1 // pred_fallthru
      _
    // Predicated region
    $region34: #{discrete_actor_forward.1} parent=1 // pred_check
      _
    $region35: #{discrete_actor_forward.1} parent=1 // pred_check_branch
      %302 = sbr.rel (0) target = $region37
    $region36: #{discrete_actor_forward.1} parent=1 // pred_region
      _
    $region37: #{discrete_actor_forward.1} parent=1 // pred_fallthru
      _
    // Predicated region
    $region38: #{discrete_actor_forward.1} parent=1 // pred_check
      _
    $region39: #{discrete_actor_forward.1} parent=1 // pred_check_branch
      %304 = sbr.rel (0) target = $region41
    $region40: #{discrete_actor_forward.1} parent=1 // pred_region
      _
    $region41: #{discrete_actor_forward.1} parent=1 // pred_fallthru
      _
    // Predicated region
    $region42: #{discrete_actor_forward.1} parent=1 // pred_check
      _
    $region43: #{discrete_actor_forward.1} parent=1 // pred_check_branch
      %306 = sbr.rel (0) target = $region45
    $region44: #{discrete_actor_forward.1} parent=1 // pred_region
      _
    $region45: #{discrete_actor_forward.1} parent=1 // pred_fallthru
      _
    %307 = vsyncpa [#allocation3], 1

</llo_original>
